<compile_context>
chip_gen: v7x
topology: tpu7x:2x2x1
jax: 0.10.0
libtpu: 0.0.40
codegen_flags: <defaults>
</compile_context>

<pallas_src>
from typing import List, Tuple

import jax
import jax.numpy as jnp
from jax.experimental import pallas as pl
from jax.experimental.pallas import tpu as pltpu

ORBITALS = '1s 2s 2p 3s 3p 4s 3d 4p 5s 4d 5p 6s 4f 5d 6p 7s 5f 6d 7p 6f 7d 7f'.split()
POSSIBLE_ELECTRONS = dict(s=2, p=6, d=10, f=14)


def _electron_config(atomic_num: int) -> List[int]:
    electron_count, last_idx, config = (0, -1, [])
    for i in ORBITALS:
        if electron_count < atomic_num:
            config.append(POSSIBLE_ELECTRONS[i[-1]])
            electron_count += POSSIBLE_ELECTRONS[i[-1]]
            last_idx += 1
        else:
            config.append(0)
    if electron_count > atomic_num:
        config[last_idx] -= electron_count - atomic_num
    return config


# (119, 22) fixed embedding table.
ELECTRON_CONFIG = jnp.asarray(
    [_electron_config(i) for i in range(119)], dtype=jnp.float32
)

_LANES = 128          # lane width; one-hot depth per hi/lo half (119 padded -> 128)
_K2 = 2 * _LANES      # hi/lo-packed contraction depth


def _round_up(x: int, m: int) -> int:
    return -(-x // m) * m


def _cdiv(a: int, b: int) -> int:
    return -(-a // b)


def embedding_kernel(z_ref, fused_ref, o_ref):
    """z_ref: (T, 1) int32 nuclear charges (padded rows hold 0).
    fused_ref: (256, Dp) bf16; rows [0:128) = bf16(table @ W + b) ("hi"),
               rows [128:256) = bf16 residual ("lo").
    o_ref: (T, Dp) f32.

    One bf16 MXU matmul: a "two-hot" LHS (hot at z and z+128) gathers and sums
    the hi + lo rows with f32 accumulation -> (Embedding o Linear) in one pass.
    NOTE: out-of-range z (<0 or >=119) silently yields an all-zero output row
    instead of raising like torch.nn.Embedding; atomic numbers <= 118 are fine.
    """
    t = z_ref.shape[0]
    k2 = fused_ref.shape[0]  # 256
    col = jax.lax.broadcasted_iota(jnp.int32, (t, k2), 1)
    twohot = ((col & (_LANES - 1)) == z_ref[...]).astype(jnp.bfloat16)
    o_ref[...] = jnp.dot(twohot, fused_ref[...],
                         preferred_element_type=jnp.float32)


def _plan_tiles(n_a: int, d_pad: int, *, target_step_bytes: int = 4 << 20,
                max_tile: int = 4096) -> Tuple[int, int, int]:
    """Pick (tile, num_tiles, n_pad): balanced, 8-aligned atom tiles whose f32
    output block is ~target_step_bytes, with >= 2 grid steps when there is
    enough work so both v7x TensorCores engage on the 'parallel' axis."""
    n_rounded = _round_up(max(n_a, 1), 8)
    cap = max(8, (target_step_bytes // (d_pad * 4)) // 8 * 8)
    cap = min(cap, max_tile)
    num_tiles = _cdiv(n_rounded, cap)
    if num_tiles < 2 and n_rounded >= 256:
        num_tiles = 2  # megacore: give each v7x TC at least one grid step
    tile = _round_up(_cdiv(n_rounded, num_tiles), 8)
    num_tiles = _cdiv(n_rounded, tile)
    return tile, num_tiles, tile * num_tiles


def _fused_table(table, weight, bias, d_pad: int):
    """(table @ weight + bias), row-padded to 128 and lane-padded to d_pad,
    then split into an exact hi/lo bf16 stack of shape (256, d_pad)."""
    fused = jnp.dot(table.astype(jnp.float32), weight.astype(jnp.float32),
                    preferred_element_type=jnp.float32)
    fused = fused + bias.astype(jnp.float32)[None, :]
    d = fused.shape[1]
    fused = jnp.pad(fused, ((0, _LANES - fused.shape[0]), (0, d_pad - d)))
    hi = fused.astype(jnp.bfloat16)
    lo = (fused - hi.astype(jnp.float32)).astype(jnp.bfloat16)
    return jnp.concatenate([hi, lo], axis=0)  # (256, d_pad) bf16


def embedding_forward(z, table, weight, bias, *, force_pallas: bool = False,
                      xla_fast_path_max: int = 256):
    """z: (1, n_a) int; table: (119, 22) f32; weight: (22, D) f32 (stored (in, out));
    bias: (D,) f32.  Returns (1, n_a, D) float32 == Linear(Embedding(z))."""
    n_a = z.shape[1]
    d = weight.shape[1]
    z_flat = z.reshape(n_a).astype(jnp.int32)

    # Tiny batches: a plain XLA gather of the bias-folded fused table beats the
    # pallas_call launch + per-step overhead (and a near-empty 256-wide MXU).
    if not force_pallas and n_a <= xla_fast_path_max:
        fused_f32 = (jnp.dot(table, weight, preferred_element_type=jnp.float32)
                     + bias.astype(jnp.float32)[None, :])
        return jnp.take(fused_f32, z_flat, axis=0).reshape(1, n_a, d)

    d_pad = _round_up(d, _LANES)                       # lane-dense output stores
    tile, num_tiles, n_pad = _plan_tiles(n_a, d_pad)

    fused = _fused_table(table, weight, bias, d_pad)   # (256, d_pad) bf16
    z2 = jnp.zeros((n_pad, 1), jnp.int32).at[:n_a, 0].set(z_flat)

    # VMEM footprint: double-buffered output + hi/lo table (2 buffers; constant
    # index_map so it is only DMA'd once) + lane-padded (1 -> 128) z blocks +
    # in-kernel two-hot and f32 matmul result.
    vmem_bytes = (2 * tile * d_pad * 4
                  + 2 * _K2 * d_pad * 2
                  + 2 * tile * _LANES * 4
                  + tile * _K2 * 2
                  + tile * d_pad * 4)
    vmem_limit = int(min(max(2 * vmem_bytes, 8 << 20), 48 << 20))

    cost = pl.CostEstimate(
        flops=2 * n_pad * _K2 * d_pad,
        transcendentals=0,
        bytes_accessed=n_pad * 4 + _K2 * d_pad * 2 + n_pad * d_pad * 4,
    )

    out = pl.pallas_call(
        embedding_kernel,
        out_shape=jax.ShapeDtypeStruct((n_pad, d_pad), jnp.float32),
        grid_spec=pltpu.PrefetchScalarGridSpec(
            num_scalar_prefetch=0,
            grid=(num_tiles,),
            in_specs=[
                pl.BlockSpec((tile, 1), lambda i: (i, 0)),      # z tile
                pl.BlockSpec((_K2, d_pad), lambda i: (0, 0)),   # hi/lo table (resident)
            ],
            out_specs=pl.BlockSpec((tile, d_pad), lambda i: (i, 0)),
        ),
        compiler_params=pltpu.CompilerParams(
            dimension_semantics=("parallel",),
            vmem_limit_bytes=vmem_limit),
        cost_estimate=cost,
    )(z2, fused)

    return out[:n_a, :d].reshape(1, n_a, d)


if __name__ == "__main__":
    embedding_dim = 128

    key = jax.random.PRNGKey(0)
    kz, kw, kb, kz2 = jax.random.split(key, 4)

    # Deterministic "Linear(22, embedding_dim)" parameters (kaiming-uniform-like).
    fan_in = 22
    bound = 1.0 / (fan_in ** 0.5)
    weight = jax.random.uniform(kw, (fan_in, embedding_dim),
                                minval=-bound, maxval=bound,
                                dtype=jnp.float32)  # stored transposed: (in, out)
    bias = jax.random.uniform(kb, (embedding_dim,),
                              minval=-bound, maxval=bound, dtype=jnp.float32)

    def reference(z):
        return ELECTRON_CONFIG[z] @ weight + bias  # (1, n_a, D)

    # --- case 1: small molecule (single grid step), Pallas path forced ---
    n_a = 37
    z = jax.random.randint(kz, (1, n_a), minval=1, maxval=119, dtype=jnp.int32)
    out = jax.block_until_ready(
        embedding_forward(z, ELECTRON_CONFIG, weight, bias, force_pallas=True))
    ref = reference(z)
    assert out.shape == (1, n_a, embedding_dim)
    assert jnp.allclose(out, ref, atol=1e-4, rtol=1e-4), (
        float(jnp.max(jnp.abs(out - ref))))

    # XLA fast path (auto-selected for tiny n_a) must also match.
    out_fast = jax.block_until_ready(
        embedding_forward(z, ELECTRON_CONFIG, weight, bias))
    assert jnp.allclose(out_fast, ref, atol=1e-4, rtol=1e-4)

    # --- case 2: larger system -> balanced 2-step grid (v7x megacore split) ---
    n_a2 = 300
    z2 = jax.random.randint(kz2, (1, n_a2), minval=1, maxval=119, dtype=jnp.int32)
    out2 = jax.block_until_ready(
        embedding_forward(z2, ELECTRON_CONFIG, weight, bias, force_pallas=True))
    ref2 = reference(z2)
    assert out2.shape == (1, n_a2, embedding_dim)
    assert jnp.allclose(out2, ref2, atol=1e-4, rtol=1e-4), (
        float(jnp.max(jnp.abs(out2 - ref2))))

    print("KERNEL_OK")
</pallas_src>

<mosaic_0001>
module attributes {stable_mosaic.version = 11 : i64} {
  func.func @embedding_kernel(%arg0: i32, %arg1: memref<40x1xi32, #tpu.memory_space<vmem>>, %arg2: memref<256x128xbf16, #tpu.memory_space<vmem>>, %arg3: memref<40x128xf32, #tpu.memory_space<vmem>>) attributes {dimension_semantics = [#tpu.dimension_semantics<parallel>], iteration_bounds = array<i64: 1>, scalar_prefetch = 0 : i64, scratch_operands = 0 : i64, tpu.core_type = #tpu.core_type<tc>, window_params = [{transform_indices = @transform_0, window_bounds = array<i64: 40, 1>}, {pipeline_mode = #tpu.pipeline_mode<synchronous>, transform_indices = @transform_1, window_bounds = array<i64: 256, 128>}, {transform_indices = @transform_2, window_bounds = array<i64: 40, 128>}]} {
    %0 = tpu.iota {dimensions = array<i32: 1>} : vector<40x256xi32>
    %c127_i32 = arith.constant 127 : i32
    %1 = vector.broadcast %c127_i32 : i32 to vector<40x256xi32>
    %2 = arith.andi %0, %1 : vector<40x256xi32>
    %c0 = arith.constant 0 : index
    %c0_0 = arith.constant 0 : index
    %3 = vector.load %arg1[%c0, %c0_0] : memref<40x1xi32, #tpu.memory_space<vmem>>, vector<40x1xi32>
    %4 = vector.broadcast %3 : vector<40x1xi32> to vector<40x256xi32>
    %5 = arith.cmpi eq, %2, %4 : vector<40x256xi32>
    %6 = arith.extui %5 : vector<40x256xi1> to vector<40x256xi32>
    %7 = arith.sitofp %6 : vector<40x256xi32> to vector<40x256xf32>
    %8 = arith.truncf %7 : vector<40x256xf32> to vector<40x256xbf16>
    %c0_1 = arith.constant 0 : index
    %c0_2 = arith.constant 0 : index
    %9 = vector.load %arg2[%c0_1, %c0_2] : memref<256x128xbf16, #tpu.memory_space<vmem>>, vector<256x128xbf16>
    %cst = arith.constant dense<0.000000e+00> : vector<40x128xf32>
    %10 = tpu.matmul %8, %9, %cst {dimension_numbers = #tpu.dot_dimension_numbers<[1], [0], [0], [1], [0, 0, 1, 1], [], []>} : vector<40x256xbf16>, vector<256x128xbf16>, vector<40x128xf32> -> vector<40x128xf32>
    %c0_3 = arith.constant 0 : index
    %c0_4 = arith.constant 0 : index
    %11 = vector.load %arg3[%c0_3, %c0_4] : memref<40x128xf32, #tpu.memory_space<vmem>>, vector<40x128xf32>
    tpu.vector_store %arg3[%c0_3, %c0_4], %10 {strides = array<i32>} : memref<40x128xf32, #tpu.memory_space<vmem>>, vector<40x128xf32>,
    return
  }
  func.func @transform_0(%arg0: i32) -> (i32, i32) {
    %c0_i32 = arith.constant 0 : i32
    %c0_i32_0 = arith.constant 0 : i32
    return %arg0, %c0_i32 : i32, i32
  }
  func.func @transform_1(%arg0: i32) -> (i32, i32) {
    %c0_i32 = arith.constant 0 : i32
    %c0_i32_0 = arith.constant 0 : i32
    %c0_i32_1 = arith.constant 0 : i32
    return %c0_i32, %c0_i32_0 : i32, i32
  }
  func.func @transform_2(%arg0: i32) -> (i32, i32) {
    %c0_i32 = arith.constant 0 : i32
    %c0_i32_0 = arith.constant 0 : i32
    return %arg0, %c0_i32 : i32, i32
  }
}

</mosaic_0001>

<llo_original>
// kernel: tpu_custom_call.1
$region0: #{tpu_custom_call.1}
  #allocation0 [shape = 'u32[]', space=smem, size = 0x4, offset = 0x4, fixed_abs, tag = 'smem constant byte address 0x4 - core index']
  #allocation1 [shape = 'u32[144,128]{1,0:T(1,128)}', space=vmem, size = 0x12000, scoped, tag = 'internal scratch']
  %s0 = inlined_call_operand.vmem [shape: s32[40,1], index: 0, kind: input, shape index: {}]
  %s1 = inlined_call_operand.hbm [shape: bf16[256,128], index: 1, kind: input, shape index: {}]
  %s2 = inlined_call_operand.hbm [shape: f32[40,128], index: 2, kind: output, shape index: {}]
  %s3 = sld [smem:[#allocation0]]
  $region22: #{tpu_custom_call.1} parent=0
    _
  %s5 = ssub.s32 1, %s3
  %s6 = scalar_select 0, %s5, %s3
  $region1: #{tpu_custom_call.1} parent=0
    #allocation2 [shape = 'u8[65536]{0}', space=vmem, size = 0x10000, scoped, tag = 'input window, operand 1, single buffered']
    #allocation3 [shape = 's32[1]{0}', space=sflag, size = 0x4, scoped, tag = 'scoped memory for tpu_custom_call.1']
    #allocation4 [shape = 's32[1]{0}', space=sflag, size = 0x4, scoped, tag = 'scoped memory for tpu_custom_call.1']
    #allocation5 [shape = 'u8[20480]{0}', space=vmem, size = 0x5000, scoped, tag = 'output window, operand 0, single buffered']
    %7 = vsyncpa [#allocation3], 0
    %8 = vsyncpa [#allocation4], 0
    // Predicated region
    $region2: #{tpu_custom_call.1} parent=1 // pred_check
      _
    $region3: #{tpu_custom_call.1} parent=1 // pred_check_branch
      %10 = sbr.rel (0) target = $region5
    $region4: #{tpu_custom_call.1} parent=1 // pred_region
      _
    $region5: #{tpu_custom_call.1} parent=1 // pred_fallthru
      _
    // Predicated region
    $region6: #{tpu_custom_call.1} parent=1 // pred_check
      _
    $region7: #{tpu_custom_call.1} parent=1 // pred_check_branch
      %12 = sbr.rel (0) target = $region9
    $region8: #{tpu_custom_call.1} parent=1 // pred_region
      %s14 = ssub.s32 2048, 2048
      %15 = vsyncadd [#allocation3], %s14
      %s16 = sshll.u32 [#allocation2], 4
      %s17 = int_to_ptr.vmem [resolvable:$true] %s16
      %22 = dma.hbm_to_vmem [thread:$0]  %s1, 2048, %s17, [#allocation3], 64, 64, 4
    $region9: #{tpu_custom_call.1} parent=1 // pred_fallthru
      _
    // Predicated region
    $region10: #{tpu_custom_call.1} parent=1 // pred_check
      _
    $region11: #{tpu_custom_call.1} parent=1 // pred_check_branch
      %24 = sbr.rel (0) target = $region13
    $region12: #{tpu_custom_call.1} parent=1 // pred_region
      %25 = dma.done [#allocation3], 2048
    $region13: #{tpu_custom_call.1} parent=1 // pred_fallthru
      _
    %v27 = vlaneseq
    %v28 = vand.u32 %v27, 127
    %v29 = vadd.s32 %v28, 128
    %v30 = vand.u32 %v28, 127
    %v31 = vand.u32 %v29, 127
    %v32 = vld [vmem:[%s0] sm:$0xff]
    %v33 = vld [vmem:[%s0 + $0x8] sm:$0xff]
    %v34 = vld [vmem:[%s0 + $0x10] sm:$0xff]
    %v35 = vld [vmem:[%s0 + $0x18] sm:$0xff]
    %v36 = vld [vmem:[%s0 + $0x20] sm:$0xff]
    %37 = vset.pattern.permute.xlu0 0
    %38 = vperm.xlu0 %37, %v32
    %v39 = vpop.permute.xlu0 %38
    %40 = vset.pattern.permute.xlu0 0
    %41 = vperm.xlu0 %40, %v33
    %v42 = vpop.permute.xlu0 %41
    %43 = vset.pattern.permute.xlu0 0
    %44 = vperm.xlu0 %43, %v34
    %v45 = vpop.permute.xlu0 %44
    %46 = vset.pattern.permute.xlu0 0
    %47 = vperm.xlu0 %46, %v35
    %v48 = vpop.permute.xlu0 %47
    %49 = vset.pattern.permute.xlu0 0
    %50 = vperm.xlu0 %49, %v36
    %v51 = vpop.permute.xlu0 %50
    %vm52 = vcmp.eq.s32.totalorder %v30, %v39
    %vm53 = vcmp.eq.s32.totalorder %v31, %v39
    %vm54 = vcmp.eq.s32.totalorder %v30, %v42
    %vm55 = vcmp.eq.s32.totalorder %v31, %v42
    %vm56 = vcmp.eq.s32.totalorder %v30, %v45
    %vm57 = vcmp.eq.s32.totalorder %v31, %v45
    %vm58 = vcmp.eq.s32.totalorder %v30, %v48
    %vm59 = vcmp.eq.s32.totalorder %v31, %v48
    %vm60 = vcmp.eq.s32.totalorder %v30, %v51
    %vm61 = vcmp.eq.s32.totalorder %v31, %v51
    %v62 = vsel %vm52, 1, 0
    %v63 = vsel %vm53, 1, 0
    %v64 = vsel %vm54, 1, 0
    %v65 = vsel %vm55, 1, 0
    %v66 = vsel %vm56, 1, 0
    %v67 = vsel %vm57, 1, 0
    %v68 = vsel %vm58, 1, 0
    %v69 = vsel %vm59, 1, 0
    %v70 = vsel %vm60, 1, 0
    %v71 = vsel %vm61, 1, 0
    %v72 = vcvt.s32.f32 %v62
    %v73 = vcvt.s32.f32 %v63
    %v74 = vcvt.s32.f32 %v64
    %v75 = vcvt.s32.f32 %v65
    %v76 = vcvt.s32.f32 %v66
    %v77 = vcvt.s32.f32 %v67
    %v78 = vcvt.s32.f32 %v68
    %v79 = vcvt.s32.f32 %v69
    %v80 = vcvt.s32.f32 %v70
    %v81 = vcvt.s32.f32 %v71
    %v82 = vpack.c.bf16 %v74, %v72
    %v83 = vpack.c.bf16 %v75, %v73
    %v84 = vpack.c.bf16 %v78, %v76
    %v85 = vpack.c.bf16 %v79, %v77
    %v86 = vpack.c.bf16 %v80, %v80
    %v87 = vpack.c.bf16 %v81, %v81
    %v88 = vld [vmem:[#allocation2] sm:$0xf]
    %v89 = vld [vmem:[#allocation2 + $0x4] sm:$0xf]
    %v90 = vld [vmem:[#allocation2 + $0x8] sm:$0xf]
    %v91 = vld [vmem:[#allocation2 + $0xc] sm:$0xf]
    %v92 = vld [vmem:[#allocation2 + $0x10] sm:$0xf]
    %v93 = vld [vmem:[#allocation2 + $0x14] sm:$0xf]
    %v94 = vld [vmem:[#allocation2 + $0x18] sm:$0xf]
    %v95 = vld [vmem:[#allocation2 + $0x1c] sm:$0xf]
    %v96 = vld [vmem:[#allocation2 + $0x20] sm:$0xf]
    %v97 = vld [vmem:[#allocation2 + $0x24] sm:$0xf]
    %v98 = vld [vmem:[#allocation2 + $0x28] sm:$0xf]
    %v99 = vld [vmem:[#allocation2 + $0x2c] sm:$0xf]
    %v100 = vld [vmem:[#allocation2 + $0x30] sm:$0xf]
    %v101 = vld [vmem:[#allocation2 + $0x34] sm:$0xf]
    %v102 = vld [vmem:[#allocation2 + $0x38] sm:$0xf]
    %v103 = vld [vmem:[#allocation2 + $0x3c] sm:$0xf]
    %v104 = vld [vmem:[#allocation2 + $0x40] sm:$0xf]
    %v105 = vld [vmem:[#allocation2 + $0x44] sm:$0xf]
    %v106 = vld [vmem:[#allocation2 + $0x48] sm:$0xf]
    %v107 = vld [vmem:[#allocation2 + $0x4c] sm:$0xf]
    %v108 = vld [vmem:[#allocation2 + $0x50] sm:$0xf]
    %v109 = vld [vmem:[#allocation2 + $0x54] sm:$0xf]
    %v110 = vld [vmem:[#allocation2 + $0x58] sm:$0xf]
    %v111 = vld [vmem:[#allocation2 + $0x5c] sm:$0xf]
    %v112 = vld [vmem:[#allocation2 + $0x60] sm:$0xf]
    %v113 = vld [vmem:[#allocation2 + $0x64] sm:$0xf]
    %v114 = vld [vmem:[#allocation2 + $0x68] sm:$0xf]
    %v115 = vld [vmem:[#allocation2 + $0x6c] sm:$0xf]
    %v116 = vld [vmem:[#allocation2 + $0x70] sm:$0xf]
    %v117 = vld [vmem:[#allocation2 + $0x74] sm:$0xf]
    %v118 = vld [vmem:[#allocation2 + $0x78] sm:$0xf]
    %v119 = vld [vmem:[#allocation2 + $0x7c] sm:$0xf]
    %v152 = vunpack.c.l.b16 %v88
    %v153 = vunpack.c.l.b16 %v89
    %v154 = vunpack.c.l.b16 %v90
    %v155 = vunpack.c.l.b16 %v91
    %v156 = vunpack.c.l.b16 %v92
    %v157 = vunpack.c.l.b16 %v93
    %v158 = vunpack.c.l.b16 %v94
    %v159 = vunpack.c.l.b16 %v95
    %v160 = vunpack.c.l.b16 %v96
    %v161 = vunpack.c.l.b16 %v97
    %v162 = vunpack.c.l.b16 %v98
    %v163 = vunpack.c.l.b16 %v99
    %v164 = vunpack.c.l.b16 %v100
    %v165 = vunpack.c.l.b16 %v101
    %v166 = vunpack.c.l.b16 %v102
    %v167 = vunpack.c.l.b16 %v103
    %v168 = vunpack.c.l.b16 %v104
    %v169 = vunpack.c.l.b16 %v105
    %v170 = vunpack.c.l.b16 %v106
    %v171 = vunpack.c.l.b16 %v107
    %v172 = vunpack.c.l.b16 %v108
    %v173 = vunpack.c.l.b16 %v109
    %v174 = vunpack.c.l.b16 %v110
    %v175 = vunpack.c.l.b16 %v111
    %v176 = vunpack.c.l.b16 %v112
    %v177 = vunpack.c.l.b16 %v113
    %v178 = vunpack.c.l.b16 %v114
    %v179 = vunpack.c.l.b16 %v115
    %v180 = vunpack.c.l.b16 %v116
    %v181 = vunpack.c.l.b16 %v117
    %v182 = vunpack.c.l.b16 %v118
    %v183 = vunpack.c.l.b16 %v119
    %v184 = vpack.c.b16 %v153, %v152
    %v185 = vpack.c.b16 %v155, %v154
    %v186 = vpack.c.b16 %v157, %v156
    %v187 = vpack.c.b16 %v159, %v158
    %v188 = vpack.c.b16 %v161, %v160
    %v189 = vpack.c.b16 %v163, %v162
    %v190 = vpack.c.b16 %v165, %v164
    %v191 = vpack.c.b16 %v167, %v166
    %v192 = vpack.c.b16 %v169, %v168
    %v193 = vpack.c.b16 %v171, %v170
    %v194 = vpack.c.b16 %v173, %v172
    %v195 = vpack.c.b16 %v175, %v174
    %v196 = vpack.c.b16 %v177, %v176
    %v197 = vpack.c.b16 %v179, %v178
    %v198 = vpack.c.b16 %v181, %v180
    %v199 = vpack.c.b16 %v183, %v182
    %216 = vmatprep.subr.bf16.mxu0 0
    %217 = vmatpush1.bf16.msra.mxu0 %v184
    %218 = vmatprep.subr.bf16.mxu0 0
    %219 = vmatpush1.bf16.msra.mxu0 %v185
    %220 = vmatprep.subr.bf16.mxu0 0
    %221 = vmatpush1.bf16.msra.mxu0 %v186
    %222 = vmatprep.subr.bf16.mxu0 0
    %223 = vmatpush1.bf16.msra.mxu0 %v187
    %224 = vmatprep.subr.bf16.mxu0 0
    %225 = vmatpush1.bf16.msra.mxu0 %v188
    %226 = vmatprep.subr.bf16.mxu0 0
    %227 = vmatpush1.bf16.msra.mxu0 %v189
    %228 = vmatprep.subr.bf16.mxu0 0
    %229 = vmatpush1.bf16.msra.mxu0 %v190
    %230 = vmatprep.subr.bf16.mxu0 0
    %231 = vmatpush1.bf16.msra.mxu0 %v191
    %232 = vmatprep.subr.bf16.mxu0 0
    %233 = vmatpush1.bf16.msra.mxu0 %v192
    %234 = vmatprep.subr.bf16.mxu0 0
    %235 = vmatpush1.bf16.msra.mxu0 %v193
    %236 = vmatprep.subr.bf16.mxu0 0
    %237 = vmatpush1.bf16.msra.mxu0 %v194
    %238 = vmatprep.subr.bf16.mxu0 0
    %239 = vmatpush1.bf16.msra.mxu0 %v195
    %240 = vmatprep.subr.bf16.mxu0 0
    %241 = vmatpush1.bf16.msra.mxu0 %v196
    %242 = vmatprep.subr.bf16.mxu0 0
    %243 = vmatpush1.bf16.msra.mxu0 %v197
    %244 = vmatprep.subr.bf16.mxu0 0
    %245 = vmatpush1.bf16.msra.mxu0 %v198
    %246 = vmatprep.subr.bf16.mxu0 0
    %247 = vmatpush1.bf16.msra.mxu0 %v199
    %248 = vmatprep.mubr.bf16.mxu0 %v83
    %249 = vmatmul.mubr.bf16.gmra.mrb[0].mxu0 %v82
    %v250 = vpop.f32.mrb[0].mxu0
    %v251 = vadd.f32 0.0, %v250
    %v252 = vpop.f32.mrb[0].mxu0
    %v253 = vpop.f32.mrb[0].mxu0
    %v254 = vadd.f32 0.0, %v253
    %v255 = vpop.f32.mrb[0].mxu0
    %256 = vmatprep.mubr.bf16.mxu0 %v85
    %257 = vmatmul.mubr.bf16.gmra.mrb[0].mxu0 %v84
    %v258 = vpop.f32.mrb[0].mxu0
    %v259 = vadd.f32 0.0, %v258
    %v260 = vpop.f32.mrb[0].mxu0
    %v261 = vpop.f32.mrb[0].mxu0
    %v262 = vadd.f32 0.0, %v261
    %v263 = vpop.f32.mrb[0].mxu0
    %264 = vmatprep.mubr.bf16.mxu0 %v87
    %265 = vmatmul.mubr.bf16.gmra.mrb[0].mxu0 %v86
    %v266 = vpop.f32.mrb[0].mxu0
    %v267 = vadd.f32 0.0, %v266
    %v268 = vpop.f32.mrb[0].mxu0
    %v269 = vpop.f32.mrb[0].mxu0
    %v270 = vpop.f32.mrb[0].mxu0
    %271 = vdwg.mxu0
    %272 = vst [vmem:[#allocation5] sm:$0xff] %v251
    %273 = vst [vmem:[#allocation5 + $0x8] sm:$0xff] %v254
    %274 = vst [vmem:[#allocation5 + $0x10] sm:$0xff] %v259
    %275 = vst [vmem:[#allocation5 + $0x18] sm:$0xff] %v262
    %276 = vst [vmem:[#allocation5 + $0x20] sm:$0xff] %v267
    // Predicated region
    $region14: #{tpu_custom_call.1} parent=1 // pred_check
      _
    $region15: #{tpu_custom_call.1} parent=1 // pred_check_branch
      %278 = sbr.rel (0) target = $region17
    $region16: #{tpu_custom_call.1} parent=1 // pred_region
      %s280 = ssub.s32 640, 640
      %281 = vsyncadd [#allocation4], %s280
      %s282 = sshll.u32 [#allocation5], 4
      %s283 = int_to_ptr.vmem [resolvable:$true] %s282
      %288 = dma.vmem_to_hbm [thread:$0]  %s283, 640, %s2, [#allocation4], 128, 128, 8
    $region17: #{tpu_custom_call.1} parent=1 // pred_fallthru
      _
    // Predicated region
    $region18: #{tpu_custom_call.1} parent=1 // pred_check
      _
    $region19: #{tpu_custom_call.1} parent=1 // pred_check_branch
      %290 = sbr.rel (0) target = $region21
    $region20: #{tpu_custom_call.1} parent=1 // pred_region
      %291 = dma.done [#allocation4], 640
    $region21: #{tpu_custom_call.1} parent=1 // pred_fallthru
      _
    %292 = vsyncpa [#allocation3], 1
    %293 = vsyncpa [#allocation4], 1

</llo_original>
